<compile_context>
chip_gen: v7x
topology: tpu7x:2x2x1
jax: 0.10.0
libtpu: 0.0.40
codegen_flags: <defaults>
</compile_context>

<pallas_src>
import functools

import jax
import jax.numpy as jnp
from jax.experimental import pallas as pl
from jax.experimental.pallas import tpu as pltpu

EMBED_DIM = 64
N_LAYERS = 5          # one of the ablation settings [1, 5, 6, 7, 10]
OUTPUT_DIM = 2
BATCH = 64            # small demo batch

LANE = 128
SUBLANE = 16          # bf16 sublane packing granularity (also fine for f32)
MAX_ROWS_PER_TILE = 2048


def _round_up(n, m):
    return ((n + m - 1) // m) * m


def _cores_per_device():
    """TensorCores one pallas_call can span on a single device.

    v5e/v6e (and v2/v3 per-device) expose one TC; megacore v4/v5p and v7x
    expose two, which the 'parallel' grid axis shards across."""
    try:
        kind = jax.devices()[0].device_kind.lower()
    except Exception:
        return 1
    return 2 if any(t in kind for t in ("v4", "v5p", "v7")) else 1


def _choose_tiling(batch, cores):
    """One tile per available TensorCore (capped), rows rounded to SUBLANE."""
    bp = _round_up(max(batch, SUBLANE), SUBLANE)
    tiles = max(1, min(cores, bp // SUBLANE))
    tb = min(_round_up(-(-bp // tiles), SUBLANE), MAX_ROWS_PER_TILE)
    tiles = -(-bp // tb)
    return tiles * tb, tb, tiles


# ---------------------------------------------------------------------------
# Kernel
# ---------------------------------------------------------------------------
def _mlp_kernel(x_ref, wh_ref, wf_ref, o_ref, *, n_layers):
    """x_ref : (TB, DP) bf16  -- column D holds a constant 1.0 (bias fold).
    wh_ref: (L, DP, DP) bf16  -- row D of layer l is that layer's bias.
    wf_ref: (DP, OP)   bf16   -- row D is the final bias.
    o_ref : (TB, OP)   bf16."""
    h = x_ref[...]
    # n_layers is static -> unrolled; each layer = one bf16 MXU matmul with the
    # bias folded in, plus a single VPU ReLU; activation kept in bf16 between
    # layers (the cast is mandatory for the next MXU op anyway).
    for l in range(n_layers):
        z = jnp.dot(h, wh_ref[l], preferred_element_type=jnp.float32)
        h = jnp.maximum(z, 0.0).astype(jnp.bfloat16)
    o_ref[...] = jnp.dot(h, wf_ref[...],
                         preferred_element_type=jnp.float32).astype(o_ref.dtype)


# ---------------------------------------------------------------------------
# Wrapper-side layout prep
# ---------------------------------------------------------------------------
def _pad_weights(hidden_w, hidden_b, fc_w, fc_b):
    """Pad to lane-dense bf16 tiles with biases folded in as row D."""
    L, D, _ = hidden_w.shape
    O = fc_w.shape[1]
    DP = _round_up(D + 1, LANE)   # +1 row for the folded bias
    OP = _round_up(O, LANE)

    wh = jnp.zeros((L, DP, DP), jnp.float32)
    wh = wh.at[:, :D, :D].set(hidden_w.astype(jnp.float32))
    wh = wh.at[:, D, :D].set(hidden_b.astype(jnp.float32))
    wh = wh.at[:, D, D].set(1.0)          # keep the ones-column alive through ReLU

    wf = jnp.zeros((DP, OP), jnp.float32)
    wf = wf.at[:D, :O].set(fc_w.astype(jnp.float32))
    wf = wf.at[D, :O].set(fc_b.astype(jnp.float32))
    return wh.astype(jnp.bfloat16), wf.astype(jnp.bfloat16), DP, OP


def _mlp_pallas(xp, wh, wf, *, n_layers, tb):
    bp, dp = xp.shape
    op = wf.shape[1]
    L = wh.shape[0]
    kernel = functools.partial(_mlp_kernel, n_layers=n_layers)
    return pl.pallas_call(
        kernel,
        out_shape=jax.ShapeDtypeStruct((bp, op), jnp.bfloat16),
        grid=(bp // tb,),
        in_specs=[
            pl.BlockSpec((tb, dp), lambda i: (i, 0)),        # batch tile streams (bf16)
            pl.BlockSpec((L, dp, dp), lambda i: (0, 0, 0)),  # weights stay resident
            pl.BlockSpec((dp, op), lambda i: (0, 0)),        # final weight resident
        ],
        out_specs=pl.BlockSpec((tb, op), lambda i: (i, 0)),
        compiler_params=pltpu.CompilerParams(
            dimension_semantics=("parallel",)),              # dual-TC chips: shard tiles
    )(xp, wh, wf)


def make_probing_classifier(hidden_w, hidden_b, fc_w, fc_b):
    """Builds a jitted forward fn with the padded bf16 weight stack cached."""
    wh, wf, dp, _ = _pad_weights(hidden_w, hidden_b, fc_w, fc_b)
    n_layers = int(hidden_w.shape[0])
    D = int(hidden_w.shape[1])
    O = int(fc_w.shape[1])
    cores = _cores_per_device()

    @jax.jit
    def forward(x):
        B = x.shape[0]
        bp, tb, _ = _choose_tiling(B, cores)
        xp = jnp.zeros((bp, dp), jnp.bfloat16)
        xp = xp.at[:B, :D].set(x.astype(jnp.bfloat16))
        xp = xp.at[:, D].set(1.0)         # constant column feeding the bias rows
        out = _mlp_pallas(xp, wh, wf, n_layers=n_layers, tb=tb)
        return out[:B, :O].astype(jnp.float32)

    return forward


def probing_classifier_ablation(x, hidden_w, hidden_b, fc_w, fc_b):
    """One-shot convenience wrapper: x:(B,D), hidden_w:(L,D,D) (x@W form),
    hidden_b:(L,D), fc_w:(D,O), fc_b:(O,). Returns (B, O) float32."""
    return make_probing_classifier(hidden_w, hidden_b, fc_w, fc_b)(x)


# ---------------------------------------------------------------------------
# References
# ---------------------------------------------------------------------------
def _ref_forward_f32(x, hidden_w, hidden_b, fc_w, fc_b):
    h = x.astype(jnp.float32)
    for l in range(hidden_w.shape[0]):
        h = jnp.maximum(h @ hidden_w[l] + hidden_b[l], 0.0)
    return h @ fc_w + fc_b


def _ref_forward_bf16(x, hidden_w, hidden_b, fc_w, fc_b):
    """Emulates the kernel's numerics (bf16 streams, f32 accumulation,
    bias-folded padded matmuls, bf16 output)."""
    wh, wf, dp, _ = _pad_weights(hidden_w, hidden_b, fc_w, fc_b)
    B, D = x.shape
    O = fc_w.shape[1]
    xp = jnp.zeros((B, dp), jnp.bfloat16)
    xp = xp.at[:, :D].set(x.astype(jnp.bfloat16))
    xp = xp.at[:, D].set(1.0)
    h = xp
    for l in range(hidden_w.shape[0]):
        z = jnp.dot(h, wh[l], preferred_element_type=jnp.float32)
        h = jnp.maximum(z, 0.0).astype(jnp.bfloat16)
    out = jnp.dot(h, wf, preferred_element_type=jnp.float32)
    return out.astype(jnp.bfloat16).astype(jnp.float32)[:, :O]


def _init_params(key, n_layers, embed_dim, output_dim):
    """Deterministic init mimicking nn.Linear default (U(-1/sqrt(fan_in), +))."""
    keys = jax.random.split(key, 2 * n_layers + 2)
    bound = 1.0 / jnp.sqrt(jnp.float32(embed_dim))
    hidden_w = jnp.stack([
        jax.random.uniform(keys[2 * l], (embed_dim, embed_dim),
                           minval=-bound, maxval=bound, dtype=jnp.float32)
        for l in range(n_layers)
    ])
    hidden_b = jnp.stack([
        jax.random.uniform(keys[2 * l + 1], (embed_dim,),
                           minval=-bound, maxval=bound, dtype=jnp.float32)
        for l in range(n_layers)
    ])
    fc_w = jax.random.uniform(keys[-2], (embed_dim, output_dim),
                              minval=-bound, maxval=bound, dtype=jnp.float32)
    fc_b = jax.random.uniform(keys[-1], (output_dim,),
                              minval=-bound, maxval=bound, dtype=jnp.float32)
    return hidden_w, hidden_b, fc_w, fc_b


if __name__ == "__main__":
    key = jax.random.PRNGKey(0)
    k_x, k_p = jax.random.split(key)

    x = jax.random.normal(k_x, (BATCH, EMBED_DIM), dtype=jnp.float32)
    hidden_w, hidden_b, fc_w, fc_b = _init_params(k_p, N_LAYERS, EMBED_DIM, OUTPUT_DIM)

    forward = make_probing_classifier(hidden_w, hidden_b, fc_w, fc_b)
    out = jax.block_until_ready(forward(x))
    assert out.shape == (BATCH, OUTPUT_DIM), out.shape

    # Exact-numerics reference (same bf16 streams / f32 MXU accumulation).
    ref_bf16 = _ref_forward_bf16(x, hidden_w, hidden_b, fc_w, fc_b)
    assert jnp.allclose(out, ref_bf16, atol=2e-3, rtol=2e-3), \
        "mismatch vs. bf16-emulating reference"

    # Full-precision reference (looser tolerance due to bf16 matmul inputs).
    ref_f32 = _ref_forward_f32(x, hidden_w, hidden_b, fc_w, fc_b)
    assert jnp.allclose(out, ref_f32, atol=5e-2, rtol=5e-2), \
        "mismatch vs. f32 reference"

    print("KERNEL_OK")
</pallas_src>

<mosaic_0001>
module attributes {stable_mosaic.version = 11 : i64} {
  func.func @_mlp_kernel(%arg0: i32, %arg1: memref<64x128xbf16, #tpu.memory_space<vmem>>, %arg2: memref<5x128x128xbf16, #tpu.memory_space<vmem>>, %arg3: memref<128x128xbf16, #tpu.memory_space<vmem>>, %arg4: memref<64x128xbf16, #tpu.memory_space<vmem>>) attributes {dimension_semantics = [#tpu.dimension_semantics<parallel>], iteration_bounds = array<i64: 1>, scalar_prefetch = 0 : i64, scratch_operands = 0 : i64, tpu.core_type = #tpu.core_type<tc>, window_params = [{transform_indices = @transform_0, window_bounds = array<i64: 64, 128>}, {pipeline_mode = #tpu.pipeline_mode<synchronous>, transform_indices = @transform_1, window_bounds = array<i64: 5, 128, 128>}, {pipeline_mode = #tpu.pipeline_mode<synchronous>, transform_indices = @transform_2, window_bounds = array<i64: 128, 128>}, {transform_indices = @transform_3, window_bounds = array<i64: 64, 128>}]} {
    %c0 = arith.constant 0 : index
    %c0_0 = arith.constant 0 : index
    %0 = vector.load %arg1[%c0, %c0_0] : memref<64x128xbf16, #tpu.memory_space<vmem>>, vector<64x128xbf16>
    %c0_1 = arith.constant 0 : index
    %c0_2 = arith.constant 0 : index
    %c0_3 = arith.constant 0 : index
    %1 = vector.load %arg2[%c0_1, %c0_2, %c0_3] : memref<5x128x128xbf16, #tpu.memory_space<vmem>>, vector<1x128x128xbf16>
    %2 = vector.shape_cast %1 : vector<1x128x128xbf16> to vector<128x128xbf16>
    %cst = arith.constant dense<0.000000e+00> : vector<64x128xf32>
    %3 = tpu.matmul %0, %2, %cst {dimension_numbers = #tpu.dot_dimension_numbers<[1], [0], [0], [1], [0, 0, 1, 1], [], []>} : vector<64x128xbf16>, vector<128x128xbf16>, vector<64x128xf32> -> vector<64x128xf32>
    %cst_4 = arith.constant 0.000000e+00 : f32
    %4 = vector.broadcast %cst_4 : f32 to vector<64x128xf32>
    %5 = arith.maximumf %3, %4 : vector<64x128xf32>
    %6 = arith.truncf %5 : vector<64x128xf32> to vector<64x128xbf16>
    %c1 = arith.constant 1 : index
    %c0_5 = arith.constant 0 : index
    %c0_6 = arith.constant 0 : index
    %7 = vector.load %arg2[%c1, %c0_5, %c0_6] : memref<5x128x128xbf16, #tpu.memory_space<vmem>>, vector<1x128x128xbf16>
    %8 = vector.shape_cast %7 : vector<1x128x128xbf16> to vector<128x128xbf16>
    %cst_7 = arith.constant dense<0.000000e+00> : vector<64x128xf32>
    %9 = tpu.matmul %6, %8, %cst_7 {dimension_numbers = #tpu.dot_dimension_numbers<[1], [0], [0], [1], [0, 0, 1, 1], [], []>} : vector<64x128xbf16>, vector<128x128xbf16>, vector<64x128xf32> -> vector<64x128xf32>
    %cst_8 = arith.constant 0.000000e+00 : f32
    %10 = vector.broadcast %cst_8 : f32 to vector<64x128xf32>
    %11 = arith.maximumf %9, %10 : vector<64x128xf32>
    %12 = arith.truncf %11 : vector<64x128xf32> to vector<64x128xbf16>
    %c2 = arith.constant 2 : index
    %c0_9 = arith.constant 0 : index
    %c0_10 = arith.constant 0 : index
    %13 = vector.load %arg2[%c2, %c0_9, %c0_10] : memref<5x128x128xbf16, #tpu.memory_space<vmem>>, vector<1x128x128xbf16>
    %14 = vector.shape_cast %13 : vector<1x128x128xbf16> to vector<128x128xbf16>
    %cst_11 = arith.constant dense<0.000000e+00> : vector<64x128xf32>
    %15 = tpu.matmul %12, %14, %cst_11 {dimension_numbers = #tpu.dot_dimension_numbers<[1], [0], [0], [1], [0, 0, 1, 1], [], []>} : vector<64x128xbf16>, vector<128x128xbf16>, vector<64x128xf32> -> vector<64x128xf32>
    %cst_12 = arith.constant 0.000000e+00 : f32
    %16 = vector.broadcast %cst_12 : f32 to vector<64x128xf32>
    %17 = arith.maximumf %15, %16 : vector<64x128xf32>
    %18 = arith.truncf %17 : vector<64x128xf32> to vector<64x128xbf16>
    %c3 = arith.constant 3 : index
    %c0_13 = arith.constant 0 : index
    %c0_14 = arith.constant 0 : index
    %19 = vector.load %arg2[%c3, %c0_13, %c0_14] : memref<5x128x128xbf16, #tpu.memory_space<vmem>>, vector<1x128x128xbf16>
    %20 = vector.shape_cast %19 : vector<1x128x128xbf16> to vector<128x128xbf16>
    %cst_15 = arith.constant dense<0.000000e+00> : vector<64x128xf32>
    %21 = tpu.matmul %18, %20, %cst_15 {dimension_numbers = #tpu.dot_dimension_numbers<[1], [0], [0], [1], [0, 0, 1, 1], [], []>} : vector<64x128xbf16>, vector<128x128xbf16>, vector<64x128xf32> -> vector<64x128xf32>
    %cst_16 = arith.constant 0.000000e+00 : f32
    %22 = vector.broadcast %cst_16 : f32 to vector<64x128xf32>
    %23 = arith.maximumf %21, %22 : vector<64x128xf32>
    %24 = arith.truncf %23 : vector<64x128xf32> to vector<64x128xbf16>
    %c4 = arith.constant 4 : index
    %c0_17 = arith.constant 0 : index
    %c0_18 = arith.constant 0 : index
    %25 = vector.load %arg2[%c4, %c0_17, %c0_18] : memref<5x128x128xbf16, #tpu.memory_space<vmem>>, vector<1x128x128xbf16>
    %26 = vector.shape_cast %25 : vector<1x128x128xbf16> to vector<128x128xbf16>
    %cst_19 = arith.constant dense<0.000000e+00> : vector<64x128xf32>
    %27 = tpu.matmul %24, %26, %cst_19 {dimension_numbers = #tpu.dot_dimension_numbers<[1], [0], [0], [1], [0, 0, 1, 1], [], []>} : vector<64x128xbf16>, vector<128x128xbf16>, vector<64x128xf32> -> vector<64x128xf32>
    %cst_20 = arith.constant 0.000000e+00 : f32
    %28 = vector.broadcast %cst_20 : f32 to vector<64x128xf32>
    %29 = arith.maximumf %27, %28 : vector<64x128xf32>
    %30 = arith.truncf %29 : vector<64x128xf32> to vector<64x128xbf16>
    %c0_21 = arith.constant 0 : index
    %c0_22 = arith.constant 0 : index
    %31 = vector.load %arg3[%c0_21, %c0_22] : memref<128x128xbf16, #tpu.memory_space<vmem>>, vector<128x128xbf16>
    %cst_23 = arith.constant dense<0.000000e+00> : vector<64x128xf32>
    %32 = tpu.matmul %30, %31, %cst_23 {dimension_numbers = #tpu.dot_dimension_numbers<[1], [0], [0], [1], [0, 0, 1, 1], [], []>} : vector<64x128xbf16>, vector<128x128xbf16>, vector<64x128xf32> -> vector<64x128xf32>
    %33 = arith.truncf %32 : vector<64x128xf32> to vector<64x128xbf16>
    %c0_24 = arith.constant 0 : index
    %c0_25 = arith.constant 0 : index
    %34 = vector.load %arg4[%c0_24, %c0_25] : memref<64x128xbf16, #tpu.memory_space<vmem>>, vector<64x128xbf16>
    tpu.vector_store %arg4[%c0_24, %c0_25], %33 {strides = array<i32>} : memref<64x128xbf16, #tpu.memory_space<vmem>>, vector<64x128xbf16>,
    return
  }
  func.func @transform_0(%arg0: i32) -> (i32, i32) {
    %c0_i32 = arith.constant 0 : i32
    %c0_i32_0 = arith.constant 0 : i32
    return %arg0, %c0_i32 : i32, i32
  }
  func.func @transform_1(%arg0: i32) -> (i32, i32, i32) {
    %c0_i32 = arith.constant 0 : i32
    %c0_i32_0 = arith.constant 0 : i32
    %c0_i32_1 = arith.constant 0 : i32
    %c0_i32_2 = arith.constant 0 : i32
    return %c0_i32, %c0_i32_0, %c0_i32_1 : i32, i32, i32
  }
  func.func @transform_2(%arg0: i32) -> (i32, i32) {
    %c0_i32 = arith.constant 0 : i32
    %c0_i32_0 = arith.constant 0 : i32
    %c0_i32_1 = arith.constant 0 : i32
    return %c0_i32, %c0_i32_0 : i32, i32
  }
  func.func @transform_3(%arg0: i32) -> (i32, i32) {
    %c0_i32 = arith.constant 0 : i32
    %c0_i32_0 = arith.constant 0 : i32
    return %arg0, %c0_i32 : i32, i32
  }
}

</mosaic_0001>

<llo_original>
// kernel: forward.1
$region0: #{forward.1}
  #allocation0 [shape = 'u32[]', space=smem, size = 0x4, offset = 0x4, fixed_abs, tag = 'smem constant byte address 0x4 - core index']
  #allocation1 [shape = 'u32[144,128]{1,0:T(1,128)}', space=vmem, size = 0x12000, scoped, tag = 'internal scratch']
  %s0 = inlined_call_operand.vmem [shape: bf16[64,128], index: 0, kind: input, shape index: {}]
  %s1 = inlined_call_operand.hbm [shape: bf16[5,128,128], index: 1, kind: input, shape index: {}]
  %s2 = inlined_call_operand.vmem [shape: bf16[128,128], index: 2, kind: input, shape index: {}]
  %s3 = inlined_call_operand.vmem [shape: bf16[64,128], index: 3, kind: output, shape index: {}]
  %s4 = sld [smem:[#allocation0]]
  $region26: #{forward.1} parent=0
    _
  %s6 = ssub.s32 1, %s4
  %s7 = scalar_select 0, %s6, %s4
  $region1: #{forward.1} parent=0
    #allocation2 [shape = 'u8[163840]{0}', space=vmem, size = 0x28000, scoped, tag = 'input window, operand 1, single buffered']
    #allocation3 [shape = 's32[1]{0}', space=sflag, size = 0x4, scoped, tag = 'scoped memory for forward.1']
    %8 = vsyncpa [#allocation3], 0
    // Predicated region
    $region2: #{forward.1} parent=1 // pred_check
      _
    $region3: #{forward.1} parent=1 // pred_check_branch
      %10 = sbr.rel (0) target = $region5
    $region4: #{forward.1} parent=1 // pred_region
      _
    $region5: #{forward.1} parent=1 // pred_fallthru
      _
    // Predicated region
    $region6: #{forward.1} parent=1 // pred_check
      _
    $region7: #{forward.1} parent=1 // pred_check_branch
      %12 = sbr.rel (0) target = $region9
    $region8: #{forward.1} parent=1 // pred_region
      %s14 = ssub.s32 5120, 5120
      %15 = vsyncadd [#allocation3], %s14
      %s16 = sshll.u32 [#allocation2], 4
      %s17 = int_to_ptr.vmem [resolvable:$true] %s16
      %22 = dma.hbm_to_vmem [thread:$0]  %s1, 5120, %s17, [#allocation3], 64, 64, 4
    $region9: #{forward.1} parent=1 // pred_fallthru
      _
    // Predicated region
    $region10: #{forward.1} parent=1 // pred_check
      _
    $region11: #{forward.1} parent=1 // pred_check_branch
      %24 = sbr.rel (0) target = $region13
    $region12: #{forward.1} parent=1 // pred_region
      _
    $region13: #{forward.1} parent=1 // pred_fallthru
      _
    // Predicated region
    $region14: #{forward.1} parent=1 // pred_check
      _
    $region15: #{forward.1} parent=1 // pred_check_branch
      %26 = sbr.rel (0) target = $region17
    $region16: #{forward.1} parent=1 // pred_region
      %27 = dma.done [#allocation3], 5120
    $region17: #{forward.1} parent=1 // pred_fallthru
      _
    %v29 = vld [vmem:[%s0] sm:$0xf]
    %v30 = vld [vmem:[%s0 + $0x4] sm:$0xf]
    %v31 = vld [vmem:[%s0 + $0x8] sm:$0xf]
    %v32 = vld [vmem:[%s0 + $0xc] sm:$0xf]
    %v33 = vld [vmem:[%s0 + $0x10] sm:$0xf]
    %v34 = vld [vmem:[%s0 + $0x14] sm:$0xf]
    %v35 = vld [vmem:[%s0 + $0x18] sm:$0xf]
    %v36 = vld [vmem:[%s0 + $0x1c] sm:$0xf]
    %v37 = vld [vmem:[#allocation2] sm:$0xf]
    %v38 = vld [vmem:[#allocation2 + $0x4] sm:$0xf]
    %v39 = vld [vmem:[#allocation2 + $0x8] sm:$0xf]
    %v40 = vld [vmem:[#allocation2 + $0xc] sm:$0xf]
    %v41 = vld [vmem:[#allocation2 + $0x10] sm:$0xf]
    %v42 = vld [vmem:[#allocation2 + $0x14] sm:$0xf]
    %v43 = vld [vmem:[#allocation2 + $0x18] sm:$0xf]
    %v44 = vld [vmem:[#allocation2 + $0x1c] sm:$0xf]
    %v45 = vld [vmem:[#allocation2 + $0x20] sm:$0xf]
    %v46 = vld [vmem:[#allocation2 + $0x24] sm:$0xf]
    %v47 = vld [vmem:[#allocation2 + $0x28] sm:$0xf]
    %v48 = vld [vmem:[#allocation2 + $0x2c] sm:$0xf]
    %v49 = vld [vmem:[#allocation2 + $0x30] sm:$0xf]
    %v50 = vld [vmem:[#allocation2 + $0x34] sm:$0xf]
    %v51 = vld [vmem:[#allocation2 + $0x38] sm:$0xf]
    %v52 = vld [vmem:[#allocation2 + $0x3c] sm:$0xf]
    %v61 = vunpack.c.l.b16 %v29
    %v62 = vunpack.c.l.b16 %v30
    %v63 = vunpack.c.l.b16 %v31
    %v64 = vunpack.c.l.b16 %v32
    %v65 = vunpack.c.l.b16 %v33
    %v66 = vunpack.c.l.b16 %v34
    %v67 = vunpack.c.l.b16 %v35
    %v68 = vunpack.c.l.b16 %v36
    %v69 = vpack.c.b16 %v62, %v61
    %v70 = vpack.c.b16 %v64, %v63
    %v71 = vpack.c.b16 %v66, %v65
    %v72 = vpack.c.b16 %v68, %v67
    %v93 = vunpack.c.l.b16 %v37
    %v94 = vunpack.c.l.b16 %v38
    %v95 = vunpack.c.l.b16 %v39
    %v96 = vunpack.c.l.b16 %v40
    %v97 = vunpack.c.l.b16 %v41
    %v98 = vunpack.c.l.b16 %v42
    %v99 = vunpack.c.l.b16 %v43
    %v100 = vunpack.c.l.b16 %v44
    %v101 = vunpack.c.l.b16 %v45
    %v102 = vunpack.c.l.b16 %v46
    %v103 = vunpack.c.l.b16 %v47
    %v104 = vunpack.c.l.b16 %v48
    %v105 = vunpack.c.l.b16 %v49
    %v106 = vunpack.c.l.b16 %v50
    %v107 = vunpack.c.l.b16 %v51
    %v108 = vunpack.c.l.b16 %v52
    %v109 = vpack.c.b16 %v94, %v93
    %v110 = vpack.c.b16 %v96, %v95
    %v111 = vpack.c.b16 %v98, %v97
    %v112 = vpack.c.b16 %v100, %v99
    %v113 = vpack.c.b16 %v102, %v101
    %v114 = vpack.c.b16 %v104, %v103
    %v115 = vpack.c.b16 %v106, %v105
    %v116 = vpack.c.b16 %v108, %v107
    %125 = vmatprep.subr.bf16.mxu0 0
    %126 = vmatpush1.bf16.msra.mxu0 %v109
    %127 = vmatprep.subr.bf16.mxu0 0
    %128 = vmatpush1.bf16.msra.mxu0 %v110
    %129 = vmatprep.subr.bf16.mxu0 0
    %130 = vmatpush1.bf16.msra.mxu0 %v111
    %131 = vmatprep.subr.bf16.mxu0 0
    %132 = vmatpush1.bf16.msra.mxu0 %v112
    %133 = vmatprep.subr.bf16.mxu0 0
    %134 = vmatpush1.bf16.msra.mxu0 %v113
    %135 = vmatprep.subr.bf16.mxu0 0
    %136 = vmatpush1.bf16.msra.mxu0 %v114
    %137 = vmatprep.subr.bf16.mxu0 0
    %138 = vmatpush1.bf16.msra.mxu0 %v115
    %139 = vmatprep.subr.bf16.mxu0 0
    %140 = vmatpush1.bf16.msra.mxu0 %v116
    %141 = vmatprep.subr.bf16.mxu0 0
    %142 = vmatpush1.bf16.msra.mxu0 0
    %143 = vmatprep.subr.bf16.mxu0 0
    %144 = vmatpush1.bf16.msra.mxu0 0
    %145 = vmatprep.subr.bf16.mxu0 0
    %146 = vmatpush1.bf16.msra.mxu0 0
    %147 = vmatprep.subr.bf16.mxu0 0
    %148 = vmatpush1.bf16.msra.mxu0 0
    %149 = vmatprep.subr.bf16.mxu0 0
    %150 = vmatpush1.bf16.msra.mxu0 0
    %151 = vmatprep.subr.bf16.mxu0 0
    %152 = vmatpush1.bf16.msra.mxu0 0
    %153 = vmatprep.subr.bf16.mxu0 0
    %154 = vmatpush1.bf16.msra.mxu0 0
    %155 = vmatprep.subr.bf16.mxu0 0
    %156 = vmatpush1.bf16.msra.mxu0 0
    %157 = vmatprep.mubr.bf16.mxu0 0
    %158 = vmatmul.mubr.bf16.gmra.mrb[0].mxu0 %v69
    %v159 = vpop.f32.mrb[0].mxu0
    %v160 = vadd.f32 0.0, %v159
    %v161 = vpop.f32.mrb[0].mxu0
    %v162 = vpop.f32.mrb[0].mxu0
    %v163 = vadd.f32 0.0, %v162
    %v164 = vpop.f32.mrb[0].mxu0
    %165 = vmatprep.mubr.bf16.mxu0 0
    %166 = vmatmul.mubr.bf16.gmra.mrb[0].mxu0 %v70
    %v167 = vpop.f32.mrb[0].mxu0
    %v168 = vadd.f32 0.0, %v167
    %v169 = vpop.f32.mrb[0].mxu0
    %v170 = vpop.f32.mrb[0].mxu0
    %v171 = vadd.f32 0.0, %v170
    %v172 = vpop.f32.mrb[0].mxu0
    %173 = vmatprep.mubr.bf16.mxu0 0
    %174 = vmatmul.mubr.bf16.gmra.mrb[0].mxu0 %v71
    %v175 = vpop.f32.mrb[0].mxu0
    %v176 = vadd.f32 0.0, %v175
    %v177 = vpop.f32.mrb[0].mxu0
    %v178 = vpop.f32.mrb[0].mxu0
    %v179 = vadd.f32 0.0, %v178
    %v180 = vpop.f32.mrb[0].mxu0
    %181 = vmatprep.mubr.bf16.mxu0 0
    %182 = vmatmul.mubr.bf16.gmra.mrb[0].mxu0 %v72
    %v183 = vpop.f32.mrb[0].mxu0
    %v184 = vadd.f32 0.0, %v183
    %v185 = vpop.f32.mrb[0].mxu0
    %v186 = vpop.f32.mrb[0].mxu0
    %v187 = vadd.f32 0.0, %v186
    %v188 = vpop.f32.mrb[0].mxu0
    %189 = vdwg.mxu0
    %v190 = vmax.f32 %v160, 0.0
    %v191 = vmax.f32 %v163, 0.0
    %v192 = vmax.f32 %v168, 0.0
    %v193 = vmax.f32 %v171, 0.0
    %v194 = vmax.f32 %v176, 0.0
    %v195 = vmax.f32 %v179, 0.0
    %v196 = vmax.f32 %v184, 0.0
    %v197 = vmax.f32 %v187, 0.0
    %v198 = vpack.c.bf16 %v191, %v190
    %v199 = vpack.c.bf16 %v193, %v192
    %v200 = vpack.c.bf16 %v195, %v194
    %v201 = vpack.c.bf16 %v197, %v196
    %s202 = scalar_lea.vmem [#allocation2], 64
    %v203 = vld [vmem:[%s202] sm:$0xf]
    %v204 = vld [vmem:[%s202 + $0x4] sm:$0xf]
    %v205 = vld [vmem:[%s202 + $0x8] sm:$0xf]
    %v206 = vld [vmem:[%s202 + $0xc] sm:$0xf]
    %v207 = vld [vmem:[%s202 + $0x10] sm:$0xf]
    %v208 = vld [vmem:[%s202 + $0x14] sm:$0xf]
    %v209 = vld [vmem:[%s202 + $0x18] sm:$0xf]
    %v210 = vld [vmem:[%s202 + $0x1c] sm:$0xf]
    %v211 = vld [vmem:[%s202 + $0x20] sm:$0xf]
    %v212 = vld [vmem:[%s202 + $0x24] sm:$0xf]
    %v213 = vld [vmem:[%s202 + $0x28] sm:$0xf]
    %v214 = vld [vmem:[%s202 + $0x2c] sm:$0xf]
    %v215 = vld [vmem:[%s202 + $0x30] sm:$0xf]
    %v216 = vld [vmem:[%s202 + $0x34] sm:$0xf]
    %v217 = vld [vmem:[%s202 + $0x38] sm:$0xf]
    %v218 = vld [vmem:[%s202 + $0x3c] sm:$0xf]
    %v235 = vunpack.c.l.b16 %v203
    %v236 = vunpack.c.l.b16 %v204
    %v237 = vunpack.c.l.b16 %v205
    %v238 = vunpack.c.l.b16 %v206
    %v239 = vunpack.c.l.b16 %v207
    %v240 = vunpack.c.l.b16 %v208
    %v241 = vunpack.c.l.b16 %v209
    %v242 = vunpack.c.l.b16 %v210
    %v243 = vunpack.c.l.b16 %v211
    %v244 = vunpack.c.l.b16 %v212
    %v245 = vunpack.c.l.b16 %v213
    %v246 = vunpack.c.l.b16 %v214
    %v247 = vunpack.c.l.b16 %v215
    %v248 = vunpack.c.l.b16 %v216
    %v249 = vunpack.c.l.b16 %v217
    %v250 = vunpack.c.l.b16 %v218
    %v251 = vpack.c.b16 %v236, %v235
    %v252 = vpack.c.b16 %v238, %v237
    %v253 = vpack.c.b16 %v240, %v239
    %v254 = vpack.c.b16 %v242, %v241
    %v255 = vpack.c.b16 %v244, %v243
    %v256 = vpack.c.b16 %v246, %v245
    %v257 = vpack.c.b16 %v248, %v247
    %v258 = vpack.c.b16 %v250, %v249
    %267 = vmatprep.subr.bf16.mxu0 0
    %268 = vmatpush1.bf16.msra.mxu0 %v251
    %269 = vmatprep.subr.bf16.mxu0 0
    %270 = vmatpush1.bf16.msra.mxu0 %v252
    %271 = vmatprep.subr.bf16.mxu0 0
    %272 = vmatpush1.bf16.msra.mxu0 %v253
    %273 = vmatprep.subr.bf16.mxu0 0
    %274 = vmatpush1.bf16.msra.mxu0 %v254
    %275 = vmatprep.subr.bf16.mxu0 0
    %276 = vmatpush1.bf16.msra.mxu0 %v255
    %277 = vmatprep.subr.bf16.mxu0 0
    %278 = vmatpush1.bf16.msra.mxu0 %v256
    %279 = vmatprep.subr.bf16.mxu0 0
    %280 = vmatpush1.bf16.msra.mxu0 %v257
    %281 = vmatprep.subr.bf16.mxu0 0
    %282 = vmatpush1.bf16.msra.mxu0 %v258
    %283 = vmatprep.subr.bf16.mxu0 0
    %284 = vmatpush1.bf16.msra.mxu0 0
    %285 = vmatprep.subr.bf16.mxu0 0
    %286 = vmatpush1.bf16.msra.mxu0 0
    %287 = vmatprep.subr.bf16.mxu0 0
    %288 = vmatpush1.bf16.msra.mxu0 0
    %289 = vmatprep.subr.bf16.mxu0 0
    %290 = vmatpush1.bf16.msra.mxu0 0
    %291 = vmatprep.subr.bf16.mxu0 0
    %292 = vmatpush1.bf16.msra.mxu0 0
    %293 = vmatprep.subr.bf16.mxu0 0
    %294 = vmatpush1.bf16.msra.mxu0 0
    %295 = vmatprep.subr.bf16.mxu0 0
    %296 = vmatpush1.bf16.msra.mxu0 0
    %297 = vmatprep.subr.bf16.mxu0 0
    %298 = vmatpush1.bf16.msra.mxu0 0
    %299 = vmatprep.mubr.bf16.mxu0 0
    %300 = vmatmul.mubr.bf16.gmra.mrb[0].mxu0 %v198
    %v301 = vpop.f32.mrb[0].mxu0
    %v302 = vadd.f32 0.0, %v301
    %v303 = vpop.f32.mrb[0].mxu0
    %v304 = vpop.f32.mrb[0].mxu0
    %v305 = vadd.f32 0.0, %v304
    %v306 = vpop.f32.mrb[0].mxu0
    %307 = vmatprep.mubr.bf16.mxu0 0
    %308 = vmatmul.mubr.bf16.gmra.mrb[0].mxu0 %v199
    %v309 = vpop.f32.mrb[0].mxu0
    %v310 = vadd.f32 0.0, %v309
    %v311 = vpop.f32.mrb[0].mxu0
    %v312 = vpop.f32.mrb[0].mxu0
    %v313 = vadd.f32 0.0, %v312
    %v314 = vpop.f32.mrb[0].mxu0
    %315 = vmatprep.mubr.bf16.mxu0 0
    %316 = vmatmul.mubr.bf16.gmra.mrb[0].mxu0 %v200
    %v317 = vpop.f32.mrb[0].mxu0
    %v318 = vadd.f32 0.0, %v317
    %v319 = vpop.f32.mrb[0].mxu0
    %v320 = vpop.f32.mrb[0].mxu0
    %v321 = vadd.f32 0.0, %v320
    %v322 = vpop.f32.mrb[0].mxu0
    %323 = vmatprep.mubr.bf16.mxu0 0
    %324 = vmatmul.mubr.bf16.gmra.mrb[0].mxu0 %v201
    %v325 = vpop.f32.mrb[0].mxu0
    %v326 = vadd.f32 0.0, %v325
    %v327 = vpop.f32.mrb[0].mxu0
    %v328 = vpop.f32.mrb[0].mxu0
    %v329 = vadd.f32 0.0, %v328
    %v330 = vpop.f32.mrb[0].mxu0
    %331 = vdwg.mxu0
    %v332 = vmax.f32 %v302, 0.0
    %v333 = vmax.f32 %v305, 0.0
    %v334 = vmax.f32 %v310, 0.0
    %v335 = vmax.f32 %v313, 0.0
    %v336 = vmax.f32 %v318, 0.0
    %v337 = vmax.f32 %v321, 0.0
    %v338 = vmax.f32 %v326, 0.0
    %v339 = vmax.f32 %v329, 0.0
    %v340 = vpack.c.bf16 %v333, %v332
    %v341 = vpack.c.bf16 %v335, %v334
    %v342 = vpack.c.bf16 %v337, %v336
    %v343 = vpack.c.bf16 %v339, %v338
    %s344 = scalar_lea.vmem [#allocation2], 128
    %v345 = vld [vmem:[%s344] sm:$0xf]
    %v346 = vld [vmem:[%s344 + $0x4] sm:$0xf]
    %v347 = vld [vmem:[%s344 + $0x8] sm:$0xf]
    %v348 = vld [vmem:[%s344 + $0xc] sm:$0xf]
    %v349 = vld [vmem:[%s344 + $0x10] sm:$0xf]
    %v350 = vld [vmem:[%s344 + $0x14] sm:$0xf]
    %v351 = vld [vmem:[%s344 + $0x18] sm:$0xf]
    %v352 = vld [vmem:[%s344 + $0x1c] sm:$0xf]
    %v353 = vld [vmem:[%s344 + $0x20] sm:$0xf]
    %v354 = vld [vmem:[%s344 + $0x24] sm:$0xf]
    %v355 = vld [vmem:[%s344 + $0x28] sm:$0xf]
    %v356 = vld [vmem:[%s344 + $0x2c] sm:$0xf]
    %v357 = vld [vmem:[%s344 + $0x30] sm:$0xf]
    %v358 = vld [vmem:[%s344 + $0x34] sm:$0xf]
    %v359 = vld [vmem:[%s344 + $0x38] sm:$0xf]
    %v360 = vld [vmem:[%s344 + $0x3c] sm:$0xf]
    %v377 = vunpack.c.l.b16 %v345
    %v378 = vunpack.c.l.b16 %v346
    %v379 = vunpack.c.l.b16 %v347
    %v380 = vunpack.c.l.b16 %v348
    %v381 = vunpack.c.l.b16 %v349
    %v382 = vunpack.c.l.b16 %v350
    %v383 = vunpack.c.l.b16 %v351
    %v384 = vunpack.c.l.b16 %v352
    %v385 = vunpack.c.l.b16 %v353
    %v386 = vunpack.c.l.b16 %v354
    %v387 = vunpack.c.l.b16 %v355
    %v388 = vunpack.c.l.b16 %v356
    %v389 = vunpack.c.l.b16 %v357
    %v390 = vunpack.c.l.b16 %v358
    %v391 = vunpack.c.l.b16 %v359
    %v392 = vunpack.c.l.b16 %v360
    %v393 = vpack.c.b16 %v378, %v377
    %v394 = vpack.c.b16 %v380, %v379
    %v395 = vpack.c.b16 %v382, %v381
    %v396 = vpack.c.b16 %v384, %v383
    %v397 = vpack.c.b16 %v386, %v385
    %v398 = vpack.c.b16 %v388, %v387
    %v399 = vpack.c.b16 %v390, %v389
    %v400 = vpack.c.b16 %v392, %v391
    %409 = vmatprep.subr.bf16.mxu0 0
    %410 = vmatpush1.bf16.msra.mxu0 %v393
    %411 = vmatprep.subr.bf16.mxu0 0
    %412 = vmatpush1.bf16.msra.mxu0 %v394
    %413 = vmatprep.subr.bf16.mxu0 0
    %414 = vmatpush1.bf16.msra.mxu0 %v395
    %415 = vmatprep.subr.bf16.mxu0 0
    %416 = vmatpush1.bf16.msra.mxu0 %v396
    %417 = vmatprep.subr.bf16.mxu0 0
    %418 = vmatpush1.bf16.msra.mxu0 %v397
    %419 = vmatprep.subr.bf16.mxu0 0
    %420 = vmatpush1.bf16.msra.mxu0 %v398
    %421 = vmatprep.subr.bf16.mxu0 0
    %422 = vmatpush1.bf16.msra.mxu0 %v399
    %423 = vmatprep.subr.bf16.mxu0 0
    %424 = vmatpush1.bf16.msra.mxu0 %v400
    %425 = vmatprep.subr.bf16.mxu0 0
    %426 = vmatpush1.bf16.msra.mxu0 0
    %427 = vmatprep.subr.bf16.mxu0 0
    %428 = vmatpush1.bf16.msra.mxu0 0
    %429 = vmatprep.subr.bf16.mxu0 0
    %430 = vmatpush1.bf16.msra.mxu0 0
    %431 = vmatprep.subr.bf16.mxu0 0
    %432 = vmatpush1.bf16.msra.mxu0 0
    %433 = vmatprep.subr.bf16.mxu0 0
    %434 = vmatpush1.bf16.msra.mxu0 0
    %435 = vmatprep.subr.bf16.mxu0 0
    %436 = vmatpush1.bf16.msra.mxu0 0
    %437 = vmatprep.subr.bf16.mxu0 0
    %438 = vmatpush1.bf16.msra.mxu0 0
    %439 = vmatprep.subr.bf16.mxu0 0
    %440 = vmatpush1.bf16.msra.mxu0 0
    %441 = vmatprep.mubr.bf16.mxu0 0
    %442 = vmatmul.mubr.bf16.gmra.mrb[0].mxu0 %v340
    %v443 = vpop.f32.mrb[0].mxu0
    %v444 = vadd.f32 0.0, %v443
    %v445 = vpop.f32.mrb[0].mxu0
    %v446 = vpop.f32.mrb[0].mxu0
    %v447 = vadd.f32 0.0, %v446
    %v448 = vpop.f32.mrb[0].mxu0
    %449 = vmatprep.mubr.bf16.mxu0 0
    %450 = vmatmul.mubr.bf16.gmra.mrb[0].mxu0 %v341
    %v451 = vpop.f32.mrb[0].mxu0
    %v452 = vadd.f32 0.0, %v451
    %v453 = vpop.f32.mrb[0].mxu0
    %v454 = vpop.f32.mrb[0].mxu0
    %v455 = vadd.f32 0.0, %v454
    %v456 = vpop.f32.mrb[0].mxu0
    %457 = vmatprep.mubr.bf16.mxu0 0
    %458 = vmatmul.mubr.bf16.gmra.mrb[0].mxu0 %v342
    %v459 = vpop.f32.mrb[0].mxu0
    %v460 = vadd.f32 0.0, %v459
    %v461 = vpop.f32.mrb[0].mxu0
    %v462 = vpop.f32.mrb[0].mxu0
    %v463 = vadd.f32 0.0, %v462
    %v464 = vpop.f32.mrb[0].mxu0
    %465 = vmatprep.mubr.bf16.mxu0 0
    %466 = vmatmul.mubr.bf16.gmra.mrb[0].mxu0 %v343
    %v467 = vpop.f32.mrb[0].mxu0
    %v468 = vadd.f32 0.0, %v467
    %v469 = vpop.f32.mrb[0].mxu0
    %v470 = vpop.f32.mrb[0].mxu0
    %v471 = vadd.f32 0.0, %v470
    %v472 = vpop.f32.mrb[0].mxu0
    %473 = vdwg.mxu0
    %v474 = vmax.f32 %v444, 0.0
    %v475 = vmax.f32 %v447, 0.0
    %v476 = vmax.f32 %v452, 0.0
    %v477 = vmax.f32 %v455, 0.0
    %v478 = vmax.f32 %v460, 0.0
    %v479 = vmax.f32 %v463, 0.0
    %v480 = vmax.f32 %v468, 0.0
    %v481 = vmax.f32 %v471, 0.0
    %v482 = vpack.c.bf16 %v475, %v474
    %v483 = vpack.c.bf16 %v477, %v476
    %v484 = vpack.c.bf16 %v479, %v478
    %v485 = vpack.c.bf16 %v481, %v480
    %s486 = scalar_lea.vmem [#allocation2], 192
    %v487 = vld [vmem:[%s486] sm:$0xf]
    %v488 = vld [vmem:[%s486 + $0x4] sm:$0xf]
    %v489 = vld [vmem:[%s486 + $0x8] sm:$0xf]
    %v490 = vld [vmem:[%s486 + $0xc] sm:$0xf]
    %v491 = vld [vmem:[%s486 + $0x10] sm:$0xf]
    %v492 = vld [vmem:[%s486 + $0x14] sm:$0xf]
    %v493 = vld [vmem:[%s486 + $0x18] sm:$0xf]
    %v494 = vld [vmem:[%s486 + $0x1c] sm:$0xf]
    %v495 = vld [vmem:[%s486 + $0x20] sm:$0xf]
    %v496 = vld [vmem:[%s486 + $0x24] sm:$0xf]
    %v497 = vld [vmem:[%s486 + $0x28] sm:$0xf]
    %v498 = vld [vmem:[%s486 + $0x2c] sm:$0xf]
    %v499 = vld [vmem:[%s486 + $0x30] sm:$0xf]
    %v500 = vld [vmem:[%s486 + $0x34] sm:$0xf]
    %v501 = vld [vmem:[%s486 + $0x38] sm:$0xf]
    %v502 = vld [vmem:[%s486 + $0x3c] sm:$0xf]
    %v519 = vunpack.c.l.b16 %v487
    %v520 = vunpack.c.l.b16 %v488
    %v521 = vunpack.c.l.b16 %v489
    %v522 = vunpack.c.l.b16 %v490
    %v523 = vunpack.c.l.b16 %v491
    %v524 = vunpack.c.l.b16 %v492
    %v525 = vunpack.c.l.b16 %v493
    %v526 = vunpack.c.l.b16 %v494
    %v527 = vunpack.c.l.b16 %v495
    %v528 = vunpack.c.l.b16 %v496
    %v529 = vunpack.c.l.b16 %v497
    %v530 = vunpack.c.l.b16 %v498
    %v531 = vunpack.c.l.b16 %v499
    %v532 = vunpack.c.l.b16 %v500
    %v533 = vunpack.c.l.b16 %v501
    %v534 = vunpack.c.l.b16 %v502
    %v535 = vpack.c.b16 %v520, %v519
    %v536 = vpack.c.b16 %v522, %v521
    %v537 = vpack.c.b16 %v524, %v523
    %v538 = vpack.c.b16 %v526, %v525
    %v539 = vpack.c.b16 %v528, %v527
    %v540 = vpack.c.b16 %v530, %v529
    %v541 = vpack.c.b16 %v532, %v531
    %v542 = vpack.c.b16 %v534, %v533
    %551 = vmatprep.subr.bf16.mxu0 0
    %552 = vmatpush1.bf16.msra.mxu0 %v535
    %553 = vmatprep.subr.bf16.mxu0 0
    %554 = vmatpush1.bf16.msra.mxu0 %v536
    %555 = vmatprep.subr.bf16.mxu0 0
    %556 = vmatpush1.bf16.msra.mxu0 %v537
    %557 = vmatprep.subr.bf16.mxu0 0
    %558 = vmatpush1.bf16.msra.mxu0 %v538
    %559 = vmatprep.subr.bf16.mxu0 0
    %560 = vmatpush1.bf16.msra.mxu0 %v539
    %561 = vmatprep.subr.bf16.mxu0 0
    %562 = vmatpush1.bf16.msra.mxu0 %v540
    %563 = vmatprep.subr.bf16.mxu0 0
    %564 = vmatpush1.bf16.msra.mxu0 %v541
    %565 = vmatprep.subr.bf16.mxu0 0
    %566 = vmatpush1.bf16.msra.mxu0 %v542
    %567 = vmatprep.subr.bf16.mxu0 0
    %568 = vmatpush1.bf16.msra.mxu0 0
    %569 = vmatprep.subr.bf16.mxu0 0
    %570 = vmatpush1.bf16.msra.mxu0 0
    %571 = vmatprep.subr.bf16.mxu0 0
    %572 = vmatpush1.bf16.msra.mxu0 0
    %573 = vmatprep.subr.bf16.mxu0 0
    %574 = vmatpush1.bf16.msra.mxu0 0
    %575 = vmatprep.subr.bf16.mxu0 0
    %576 = vmatpush1.bf16.msra.mxu0 0
    %577 = vmatprep.subr.bf16.mxu0 0
    %578 = vmatpush1.bf16.msra.mxu0 0
    %579 = vmatprep.subr.bf16.mxu0 0
    %580 = vmatpush1.bf16.msra.mxu0 0
    %581 = vmatprep.subr.bf16.mxu0 0
    %582 = vmatpush1.bf16.msra.mxu0 0
    %583 = vmatprep.mubr.bf16.mxu0 0
    %584 = vmatmul.mubr.bf16.gmra.mrb[0].mxu0 %v482
    %v585 = vpop.f32.mrb[0].mxu0
    %v586 = vadd.f32 0.0, %v585
    %v587 = vpop.f32.mrb[0].mxu0
    %v588 = vpop.f32.mrb[0].mxu0
    %v589 = vadd.f32 0.0, %v588
    %v590 = vpop.f32.mrb[0].mxu0
    %591 = vmatprep.mubr.bf16.mxu0 0
    %592 = vmatmul.mubr.bf16.gmra.mrb[0].mxu0 %v483
    %v593 = vpop.f32.mrb[0].mxu0
    %v594 = vadd.f32 0.0, %v593
    %v595 = vpop.f32.mrb[0].mxu0
    %v596 = vpop.f32.mrb[0].mxu0
    %v597 = vadd.f32 0.0, %v596
    %v598 = vpop.f32.mrb[0].mxu0
    %599 = vmatprep.mubr.bf16.mxu0 0
    %600 = vmatmul.mubr.bf16.gmra.mrb[0].mxu0 %v484
    %v601 = vpop.f32.mrb[0].mxu0
    %v602 = vadd.f32 0.0, %v601
    %v603 = vpop.f32.mrb[0].mxu0
    %v604 = vpop.f32.mrb[0].mxu0
    %v605 = vadd.f32 0.0, %v604
    %v606 = vpop.f32.mrb[0].mxu0
    %607 = vmatprep.mubr.bf16.mxu0 0
    %608 = vmatmul.mubr.bf16.gmra.mrb[0].mxu0 %v485
    %v609 = vpop.f32.mrb[0].mxu0
    %v610 = vadd.f32 0.0, %v609
    %v611 = vpop.f32.mrb[0].mxu0
    %v612 = vpop.f32.mrb[0].mxu0
    %v613 = vadd.f32 0.0, %v612
    %v614 = vpop.f32.mrb[0].mxu0
    %615 = vdwg.mxu0
    %v616 = vmax.f32 %v586, 0.0
    %v617 = vmax.f32 %v589, 0.0
    %v618 = vmax.f32 %v594, 0.0
    %v619 = vmax.f32 %v597, 0.0
    %v620 = vmax.f32 %v602, 0.0
    %v621 = vmax.f32 %v605, 0.0
    %v622 = vmax.f32 %v610, 0.0
    %v623 = vmax.f32 %v613, 0.0
    %v624 = vpack.c.bf16 %v617, %v616
    %v625 = vpack.c.bf16 %v619, %v618
    %v626 = vpack.c.bf16 %v621, %v620
    %v627 = vpack.c.bf16 %v623, %v622
    %s628 = scalar_lea.vmem [#allocation2], 256
    %v629 = vld [vmem:[%s628] sm:$0xf]
    %v630 = vld [vmem:[%s628 + $0x4] sm:$0xf]
    %v631 = vld [vmem:[%s628 + $0x8] sm:$0xf]
    %v632 = vld [vmem:[%s628 + $0xc] sm:$0xf]
    %v633 = vld [vmem:[%s628 + $0x10] sm:$0xf]
    %v634 = vld [vmem:[%s628 + $0x14] sm:$0xf]
    %v635 = vld [vmem:[%s628 + $0x18] sm:$0xf]
    %v636 = vld [vmem:[%s628 + $0x1c] sm:$0xf]
    %v637 = vld [vmem:[%s628 + $0x20] sm:$0xf]
    %v638 = vld [vmem:[%s628 + $0x24] sm:$0xf]
    %v639 = vld [vmem:[%s628 + $0x28] sm:$0xf]
    %v640 = vld [vmem:[%s628 + $0x2c] sm:$0xf]
    %v641 = vld [vmem:[%s628 + $0x30] sm:$0xf]
    %v642 = vld [vmem:[%s628 + $0x34] sm:$0xf]
    %v643 = vld [vmem:[%s628 + $0x38] sm:$0xf]
    %v644 = vld [vmem:[%s628 + $0x3c] sm:$0xf]
    %v661 = vunpack.c.l.b16 %v629
    %v662 = vunpack.c.l.b16 %v630
    %v663 = vunpack.c.l.b16 %v631
    %v664 = vunpack.c.l.b16 %v632
    %v665 = vunpack.c.l.b16 %v633
    %v666 = vunpack.c.l.b16 %v634
    %v667 = vunpack.c.l.b16 %v635
    %v668 = vunpack.c.l.b16 %v636
    %v669 = vunpack.c.l.b16 %v637
    %v670 = vunpack.c.l.b16 %v638
    %v671 = vunpack.c.l.b16 %v639
    %v672 = vunpack.c.l.b16 %v640
    %v673 = vunpack.c.l.b16 %v641
    %v674 = vunpack.c.l.b16 %v642
    %v675 = vunpack.c.l.b16 %v643
    %v676 = vunpack.c.l.b16 %v644
    %v677 = vpack.c.b16 %v662, %v661
    %v678 = vpack.c.b16 %v664, %v663
    %v679 = vpack.c.b16 %v666, %v665
    %v680 = vpack.c.b16 %v668, %v667
    %v681 = vpack.c.b16 %v670, %v669
    %v682 = vpack.c.b16 %v672, %v671
    %v683 = vpack.c.b16 %v674, %v673
    %v684 = vpack.c.b16 %v676, %v675
    %693 = vmatprep.subr.bf16.mxu0 0
    %694 = vmatpush1.bf16.msra.mxu0 %v677
    %695 = vmatprep.subr.bf16.mxu0 0
    %696 = vmatpush1.bf16.msra.mxu0 %v678
    %697 = vmatprep.subr.bf16.mxu0 0
    %698 = vmatpush1.bf16.msra.mxu0 %v679
    %699 = vmatprep.subr.bf16.mxu0 0
    %700 = vmatpush1.bf16.msra.mxu0 %v680
    %701 = vmatprep.subr.bf16.mxu0 0
    %702 = vmatpush1.bf16.msra.mxu0 %v681
    %703 = vmatprep.subr.bf16.mxu0 0
    %704 = vmatpush1.bf16.msra.mxu0 %v682
    %705 = vmatprep.subr.bf16.mxu0 0
    %706 = vmatpush1.bf16.msra.mxu0 %v683
    %707 = vmatprep.subr.bf16.mxu0 0
    %708 = vmatpush1.bf16.msra.mxu0 %v684
    %709 = vmatprep.subr.bf16.mxu0 0
    %710 = vmatpush1.bf16.msra.mxu0 0
    %711 = vmatprep.subr.bf16.mxu0 0
    %712 = vmatpush1.bf16.msra.mxu0 0
    %713 = vmatprep.subr.bf16.mxu0 0
    %714 = vmatpush1.bf16.msra.mxu0 0
    %715 = vmatprep.subr.bf16.mxu0 0
    %716 = vmatpush1.bf16.msra.mxu0 0
    %717 = vmatprep.subr.bf16.mxu0 0
    %718 = vmatpush1.bf16.msra.mxu0 0
    %719 = vmatprep.subr.bf16.mxu0 0
    %720 = vmatpush1.bf16.msra.mxu0 0
    %721 = vmatprep.subr.bf16.mxu0 0
    %722 = vmatpush1.bf16.msra.mxu0 0
    %723 = vmatprep.subr.bf16.mxu0 0
    %724 = vmatpush1.bf16.msra.mxu0 0
    %725 = vmatprep.mubr.bf16.mxu0 0
    %726 = vmatmul.mubr.bf16.gmra.mrb[0].mxu0 %v624
    %v727 = vpop.f32.mrb[0].mxu0
    %v728 = vadd.f32 0.0, %v727
    %v729 = vpop.f32.mrb[0].mxu0
    %v730 = vpop.f32.mrb[0].mxu0
    %v731 = vadd.f32 0.0, %v730
    %v732 = vpop.f32.mrb[0].mxu0
    %733 = vmatprep.mubr.bf16.mxu0 0
    %734 = vmatmul.mubr.bf16.gmra.mrb[0].mxu0 %v625
    %v735 = vpop.f32.mrb[0].mxu0
    %v736 = vadd.f32 0.0, %v735
    %v737 = vpop.f32.mrb[0].mxu0
    %v738 = vpop.f32.mrb[0].mxu0
    %v739 = vadd.f32 0.0, %v738
    %v740 = vpop.f32.mrb[0].mxu0
    %741 = vmatprep.mubr.bf16.mxu0 0
    %742 = vmatmul.mubr.bf16.gmra.mrb[0].mxu0 %v626
    %v743 = vpop.f32.mrb[0].mxu0
    %v744 = vadd.f32 0.0, %v743
    %v745 = vpop.f32.mrb[0].mxu0
    %v746 = vpop.f32.mrb[0].mxu0
    %v747 = vadd.f32 0.0, %v746
    %v748 = vpop.f32.mrb[0].mxu0
    %749 = vmatprep.mubr.bf16.mxu0 0
    %750 = vmatmul.mubr.bf16.gmra.mrb[0].mxu0 %v627
    %v751 = vpop.f32.mrb[0].mxu0
    %v752 = vadd.f32 0.0, %v751
    %v753 = vpop.f32.mrb[0].mxu0
    %v754 = vpop.f32.mrb[0].mxu0
    %v755 = vadd.f32 0.0, %v754
    %v756 = vpop.f32.mrb[0].mxu0
    %757 = vdwg.mxu0
    %v758 = vmax.f32 %v728, 0.0
    %v759 = vmax.f32 %v731, 0.0
    %v760 = vmax.f32 %v736, 0.0
    %v761 = vmax.f32 %v739, 0.0
    %v762 = vmax.f32 %v744, 0.0
    %v763 = vmax.f32 %v747, 0.0
    %v764 = vmax.f32 %v752, 0.0
    %v765 = vmax.f32 %v755, 0.0
    %v766 = vpack.c.bf16 %v759, %v758
    %v767 = vpack.c.bf16 %v761, %v760
    %v768 = vpack.c.bf16 %v763, %v762
    %v769 = vpack.c.bf16 %v765, %v764
    %v770 = vld [vmem:[%s2] sm:$0xf]
    %v771 = vld [vmem:[%s2 + $0x4] sm:$0xf]
    %v772 = vld [vmem:[%s2 + $0x8] sm:$0xf]
    %v773 = vld [vmem:[%s2 + $0xc] sm:$0xf]
    %v774 = vld [vmem:[%s2 + $0x10] sm:$0xf]
    %v775 = vld [vmem:[%s2 + $0x14] sm:$0xf]
    %v776 = vld [vmem:[%s2 + $0x18] sm:$0xf]
    %v777 = vld [vmem:[%s2 + $0x1c] sm:$0xf]
    %v778 = vld [vmem:[%s2 + $0x20] sm:$0xf]
    %v779 = vld [vmem:[%s2 + $0x24] sm:$0xf]
    %v780 = vld [vmem:[%s2 + $0x28] sm:$0xf]
    %v781 = vld [vmem:[%s2 + $0x2c] sm:$0xf]
    %v782 = vld [vmem:[%s2 + $0x30] sm:$0xf]
    %v783 = vld [vmem:[%s2 + $0x34] sm:$0xf]
    %v784 = vld [vmem:[%s2 + $0x38] sm:$0xf]
    %v785 = vld [vmem:[%s2 + $0x3c] sm:$0xf]
    %v802 = vunpack.c.l.b16 %v770
    %v803 = vunpack.c.l.b16 %v771
    %v804 = vunpack.c.l.b16 %v772
    %v805 = vunpack.c.l.b16 %v773
    %v806 = vunpack.c.l.b16 %v774
    %v807 = vunpack.c.l.b16 %v775
    %v808 = vunpack.c.l.b16 %v776
    %v809 = vunpack.c.l.b16 %v777
    %v810 = vunpack.c.l.b16 %v778
    %v811 = vunpack.c.l.b16 %v779
    %v812 = vunpack.c.l.b16 %v780
    %v813 = vunpack.c.l.b16 %v781
    %v814 = vunpack.c.l.b16 %v782
    %v815 = vunpack.c.l.b16 %v783
    %v816 = vunpack.c.l.b16 %v784
    %v817 = vunpack.c.l.b16 %v785
    %v818 = vpack.c.b16 %v803, %v802
    %v819 = vpack.c.b16 %v805, %v804
    %v820 = vpack.c.b16 %v807, %v806
    %v821 = vpack.c.b16 %v809, %v808
    %v822 = vpack.c.b16 %v811, %v810
    %v823 = vpack.c.b16 %v813, %v812
    %v824 = vpack.c.b16 %v815, %v814
    %v825 = vpack.c.b16 %v817, %v816
    %834 = vmatprep.subr.bf16.mxu0 0
    %835 = vmatpush1.bf16.msra.mxu0 %v818
    %836 = vmatprep.subr.bf16.mxu0 0
    %837 = vmatpush1.bf16.msra.mxu0 %v819
    %838 = vmatprep.subr.bf16.mxu0 0
    %839 = vmatpush1.bf16.msra.mxu0 %v820
    %840 = vmatprep.subr.bf16.mxu0 0
    %841 = vmatpush1.bf16.msra.mxu0 %v821
    %842 = vmatprep.subr.bf16.mxu0 0
    %843 = vmatpush1.bf16.msra.mxu0 %v822
    %844 = vmatprep.subr.bf16.mxu0 0
    %845 = vmatpush1.bf16.msra.mxu0 %v823
    %846 = vmatprep.subr.bf16.mxu0 0
    %847 = vmatpush1.bf16.msra.mxu0 %v824
    %848 = vmatprep.subr.bf16.mxu0 0
    %849 = vmatpush1.bf16.msra.mxu0 %v825
    %850 = vmatprep.subr.bf16.mxu0 0
    %851 = vmatpush1.bf16.msra.mxu0 0
    %852 = vmatprep.subr.bf16.mxu0 0
    %853 = vmatpush1.bf16.msra.mxu0 0
    %854 = vmatprep.subr.bf16.mxu0 0
    %855 = vmatpush1.bf16.msra.mxu0 0
    %856 = vmatprep.subr.bf16.mxu0 0
    %857 = vmatpush1.bf16.msra.mxu0 0
    %858 = vmatprep.subr.bf16.mxu0 0
    %859 = vmatpush1.bf16.msra.mxu0 0
    %860 = vmatprep.subr.bf16.mxu0 0
    %861 = vmatpush1.bf16.msra.mxu0 0
    %862 = vmatprep.subr.bf16.mxu0 0
    %863 = vmatpush1.bf16.msra.mxu0 0
    %864 = vmatprep.subr.bf16.mxu0 0
    %865 = vmatpush1.bf16.msra.mxu0 0
    %866 = vmatprep.mubr.bf16.mxu0 0
    %867 = vmatmul.mubr.bf16.gmra.mrb[0].mxu0 %v766
    %v868 = vpop.f32.mrb[0].mxu0
    %v869 = vadd.f32 0.0, %v868
    %v870 = vpop.f32.mrb[0].mxu0
    %v871 = vpop.f32.mrb[0].mxu0
    %v872 = vadd.f32 0.0, %v871
    %v873 = vpop.f32.mrb[0].mxu0
    %874 = vmatprep.mubr.bf16.mxu0 0
    %875 = vmatmul.mubr.bf16.gmra.mrb[0].mxu0 %v767
    %v876 = vpop.f32.mrb[0].mxu0
    %v877 = vadd.f32 0.0, %v876
    %v878 = vpop.f32.mrb[0].mxu0
    %v879 = vpop.f32.mrb[0].mxu0
    %v880 = vadd.f32 0.0, %v879
    %v881 = vpop.f32.mrb[0].mxu0
    %882 = vmatprep.mubr.bf16.mxu0 0
    %883 = vmatmul.mubr.bf16.gmra.mrb[0].mxu0 %v768
    %v884 = vpop.f32.mrb[0].mxu0
    %v885 = vadd.f32 0.0, %v884
    %v886 = vpop.f32.mrb[0].mxu0
    %v887 = vpop.f32.mrb[0].mxu0
    %v888 = vadd.f32 0.0, %v887
    %v889 = vpop.f32.mrb[0].mxu0
    %890 = vmatprep.mubr.bf16.mxu0 0
    %891 = vmatmul.mubr.bf16.gmra.mrb[0].mxu0 %v769
    %v892 = vpop.f32.mrb[0].mxu0
    %v893 = vadd.f32 0.0, %v892
    %v894 = vpop.f32.mrb[0].mxu0
    %v895 = vpop.f32.mrb[0].mxu0
    %v896 = vadd.f32 0.0, %v895
    %v897 = vpop.f32.mrb[0].mxu0
    %898 = vdwg.mxu0
    %v899 = vpack.c.bf16 %v872, %v869
    %v900 = vpack.c.bf16 %v880, %v877
    %v901 = vpack.c.bf16 %v888, %v885
    %v902 = vpack.c.bf16 %v896, %v893
    %v907 = vunpack.c.l.b16 %v899
    %v908 = vunpack.c.h.b16 %v899
    %v909 = vunpack.c.l.b16 %v900
    %v910 = vunpack.c.h.b16 %v900
    %v911 = vunpack.c.l.b16 %v901
    %v912 = vunpack.c.h.b16 %v901
    %v913 = vunpack.c.l.b16 %v902
    %v914 = vunpack.c.h.b16 %v902
    %v915 = vpack.c.b16 %v907, %v907
    %v916 = vpack.c.b16 %v908, %v908
    %v917 = vpack.c.b16 %v909, %v909
    %v918 = vpack.c.b16 %v910, %v910
    %v919 = vpack.c.b16 %v911, %v911
    %v920 = vpack.c.b16 %v912, %v912
    %v921 = vpack.c.b16 %v913, %v913
    %v922 = vpack.c.b16 %v914, %v914
    %931 = vst [vmem:[%s3] sm:$0xf] %v915
    %932 = vst [vmem:[%s3 + $0x4] sm:$0xf] %v916
    %933 = vst [vmem:[%s3 + $0x8] sm:$0xf] %v917
    %934 = vst [vmem:[%s3 + $0xc] sm:$0xf] %v918
    %935 = vst [vmem:[%s3 + $0x10] sm:$0xf] %v919
    %936 = vst [vmem:[%s3 + $0x14] sm:$0xf] %v920
    %937 = vst [vmem:[%s3 + $0x18] sm:$0xf] %v921
    %938 = vst [vmem:[%s3 + $0x1c] sm:$0xf] %v922
    // Predicated region
    $region18: #{forward.1} parent=1 // pred_check
      _
    $region19: #{forward.1} parent=1 // pred_check_branch
      %940 = sbr.rel (0) target = $region21
    $region20: #{forward.1} parent=1 // pred_region
      _
    $region21: #{forward.1} parent=1 // pred_fallthru
      _
    // Predicated region
    $region22: #{forward.1} parent=1 // pred_check
      _
    $region23: #{forward.1} parent=1 // pred_check_branch
      %942 = sbr.rel (0) target = $region25
    $region24: #{forward.1} parent=1 // pred_region
      _
    $region25: #{forward.1} parent=1 // pred_fallthru
      _
    %943 = vsyncpa [#allocation3], 1

</llo_original>
